<compile_context>
chip_gen: v5e
topology: v5e:2x2
jax: 0.10.0
libtpu: 0.0.40
codegen_flags: <defaults>
</compile_context>

<pallas_src>
import numpy as np
import jax
import jax.numpy as jnp
from jax.experimental import pallas as pl
from jax.experimental.pallas import tpu as pltpu

_LANE = 128


def _round_up(a, m):
    return ((a + m - 1) // m) * m


def _fused_block_kernel(w_ref, x_ref, o_ref):
    # w_ref: [O, C_in]  effective weight (resident across the whole grid)
    # x_ref: [C_in, Tn] input tile (batch dim squeezed), channel-first
    # o_ref: [O, Tn]    output tile (lane-dense when Tn is a multiple of 128)
    o_ref[...] = jnp.dot(
        w_ref[...], x_ref[...], preferred_element_type=jnp.float32
    ).astype(o_ref.dtype)


def _select_spatial_tiling(S, per_lane_bytes, B, budget_bytes):
    """Pick (tile_n, padded_S).

    tile_n is a multiple of 128 that divides padded_S exactly (padded_S == S in
    the common case, i.e. no pad / slice), or the full ragged extent S when S
    is small and not 128-aligned (legal: block dim == array dim).
    """
    if S % _LANE != 0 and per_lane_bytes * S <= budget_bytes:
        return S, S  # single full-extent tile, no pad needed

    S_pad = _round_up(S, _LANE)
    tn_budget = max(_LANE, (budget_bytes // per_lane_bytes) // _LANE * _LANE)
    tn_cap = min(tn_budget, S_pad)

    # Megacore (v7x) coverage: try to keep at least ~4 grid blocks overall.
    units = S_pad // _LANE
    want_tiles = min(max(1, -(-4 // max(B, 1))), units)
    if want_tiles > 1:
        tn_cap = min(tn_cap, max(_LANE, (S_pad // want_tiles) // _LANE * _LANE))

    # Largest multiple of 128 that divides S_pad and fits the cap: exact tiling.
    best, d = 1, 1
    while d * d <= units:
        if units % d == 0:
            for c in (d, units // d):
                if c * _LANE <= tn_cap and c > best:
                    best = c
        d += 1
    tn = best * _LANE

    # Pathological fallback (no useful 128-aligned divisor, e.g. prime number
    # of lane-groups): use budget-sized tiles and pad the tail instead.
    if tn * 8 < tn_cap and S_pad > tn_cap:
        tn = tn_cap
        S_pad = _round_up(S_pad, tn)
    return tn, S_pad


def vnt_resnet_block_fc(x, params, *, vmem_budget_bytes=20 << 20, input_buffers=2):
    """VNTResnetBlockFC forward.  x: [B, C_in, 3, N] -> [B, C_out, 3, N]."""
    B, C_in, three, N = x.shape
    w0 = params["fc_0"]                 # [size_h,  size_in]
    w1 = params["fc_1"]                 # [size_out, size_h]
    ws = params.get("shortcut", None)   # [size_out, size_in] or None
    O = w1.shape[0]

    # Exact algebraic fold of the purely-linear block into one weight:
    #   out = 0.5 * (softmax(Ws) + softmax(W1) @ softmax(W0)) @_channels x
    w0s = jax.nn.softmax(w0.astype(jnp.float32), axis=1)
    w1s = jax.nn.softmax(w1.astype(jnp.float32), axis=1)
    w_chain = jnp.dot(w1s, w0s, preferred_element_type=jnp.float32)  # [O, C_in]
    if ws is None:
        if O != C_in:
            raise ValueError("identity shortcut requires size_out == size_in")
        w_eff = 0.5 * (jnp.eye(C_in, dtype=jnp.float32) + w_chain)
    else:
        w_eff = 0.5 * (jax.nn.softmax(ws.astype(jnp.float32), axis=1) + w_chain)
    w_eff = w_eff.astype(x.dtype)

    # Native channel-first consumption: flatten (3, N) -> S; no transposes.
    S = three * N
    x_flat = x.reshape(B, C_in, S)

    itemsize = np.dtype(x.dtype).itemsize
    per_lane_bytes = (input_buffers * C_in + 2 * O) * itemsize
    tn, S_pad = _select_spatial_tiling(S, per_lane_bytes, B, vmem_budget_bytes)
    if S_pad != S:
        # Rare fallback path only (ragged extent with no 128-aligned divisor).
        x_flat = jnp.pad(x_flat, ((0, 0), (0, 0), (0, S_pad - S)))

    grid = (B, S_pad // tn)

    x_spec_kwargs = {}
    if input_buffers != 2:
        # Deeper input buffering (e.g. 3 on v7x) to keep the DMA queue full.
        x_spec_kwargs["pipeline_mode"] = pl.Buffered(input_buffers)

    footprint = (input_buffers * C_in + 2 * O) * tn * itemsize + 2 * O * C_in * itemsize
    vmem_limit = int(min(max(2 * footprint, 32 << 20), 48 << 20))  # <= v7x 64 MiB

    cost = pl.CostEstimate(
        flops=2 * B * O * C_in * S,
        transcendentals=0,
        bytes_accessed=itemsize * (B * C_in * S + B * O * S + O * C_in),
    )

    out_flat = pl.pallas_call(
        _fused_block_kernel,
        out_shape=jax.ShapeDtypeStruct((B, O, S_pad), x.dtype),
        grid=grid,
        in_specs=[
            pl.BlockSpec((O, C_in), lambda b, s: (0, 0)),                 # resident
            pl.BlockSpec((pl.Squeezed(), C_in, tn), lambda b, s: (b, 0, s),
                         **x_spec_kwargs),
        ],
        out_specs=pl.BlockSpec((pl.Squeezed(), O, tn), lambda b, s: (b, 0, s)),
        compiler_params=pltpu.CompilerParams(
            dimension_semantics=("parallel", "parallel"),
            vmem_limit_bytes=vmem_limit,
        ),
        cost_estimate=cost,
    )(w_eff, x_flat)

    if S_pad != S:
        out_flat = out_flat[:, :, :S]
    return out_flat.reshape(B, O, three, N)


def _reference(x, params):
    """Plain-JAX reference mirroring the PyTorch forward (unfused matmuls)."""
    def vnt_linear(x, w):
        w = jax.nn.softmax(w, axis=1)
        return jnp.einsum("oc,bcdn->bodn", w, x)

    net = vnt_linear(x, params["fc_0"])
    dx = vnt_linear(net, params["fc_1"])
    x_s = vnt_linear(x, params["shortcut"]) if "shortcut" in params else x
    return (x_s + dx) / 2


if __name__ == "__main__":
    key = jax.random.PRNGKey(0)
    kx1, k0a, kx2, k0b, k1b, ksb, kx3, k0c = jax.random.split(key, 8)

    # Case 1: default ctor (size_out == size_h == size_in) -> identity shortcut,
    # fc_1 zero-init (forward-time softmax makes it uniform). N multiple of 128
    # so the spatial axis tiles exactly (no pad / slice), grid = (2, 2).
    B, C, N = 2, 8, 256
    x1 = jax.random.normal(kx1, (B, C, 3, N), dtype=jnp.float32)
    p1 = {
        "fc_0": jax.random.uniform(k0a, (C, C), dtype=jnp.float32),
        "fc_1": jnp.zeros((C, C), dtype=jnp.float32),
    }
    o1 = jax.block_until_ready(vnt_resnet_block_fc(x1, p1))
    np.testing.assert_allclose(np.asarray(o1), np.asarray(_reference(x1, p1)),
                               rtol=1e-5, atol=1e-5)
    assert o1.shape == (B, C, 3, N)

    # Case 2: size_in != size_out -> learned shortcut, "trained" weights.
    ci, ch, co, N2 = 8, 8, 16, 128
    x2 = jax.random.normal(kx2, (B, ci, 3, N2), dtype=jnp.float32)
    p2 = {
        "fc_0": jax.random.uniform(k0b, (ch, ci), dtype=jnp.float32),
        "fc_1": jax.random.uniform(k1b, (co, ch), dtype=jnp.float32),
        "shortcut": jax.random.uniform(ksb, (co, ci), dtype=jnp.float32),
    }
    o2 = jax.block_until_ready(vnt_resnet_block_fc(x2, p2))
    np.testing.assert_allclose(np.asarray(o2), np.asarray(_reference(x2, p2)),
                               rtol=1e-5, atol=1e-5)
    assert o2.shape == (B, co, 3, N2)

    # Case 3: ragged spatial extent (3*N not a multiple of 128) -> single
    # full-extent tile, still no wrapper-side pad or slice.
    N3 = 20
    x3 = jax.random.normal(kx3, (1, C, 3, N3), dtype=jnp.float32)
    p3 = {
        "fc_0": jax.random.uniform(k0c, (C, C), dtype=jnp.float32),
        "fc_1": jnp.zeros((C, C), dtype=jnp.float32),
    }
    o3 = jax.block_until_ready(vnt_resnet_block_fc(x3, p3))
    np.testing.assert_allclose(np.asarray(o3), np.asarray(_reference(x3, p3)),
                               rtol=1e-5, atol=1e-5)
    assert o3.shape == (1, C, 3, N3)

    print("KERNEL_OK")
</pallas_src>

<mosaic_0001>
module attributes {stable_mosaic.version = 11 : i64} {
  func.func @_fused_block_kernel(%arg0: i32, %arg1: i32, %arg2: memref<8x8xf32, #tpu.memory_space<vmem>>, %arg3: memref<1x8x384xf32, #tpu.memory_space<vmem>>, %arg4: memref<1x8x384xf32, #tpu.memory_space<vmem>>) attributes {dimension_semantics = [#tpu.dimension_semantics<parallel>, #tpu.dimension_semantics<parallel>], iteration_bounds = array<i64: 2, 2>, scalar_prefetch = 0 : i64, scratch_operands = 0 : i64, tpu.core_type = #tpu.core_type<tc>, window_params = [{pipeline_mode = #tpu.pipeline_mode<synchronous>, transform_indices = @transform_0, window_bounds = array<i64: 8, 8>}, {transform_indices = @transform_1, window_bounds = array<i64: 1, 8, 384>}, {transform_indices = @transform_2, window_bounds = array<i64: 1, 8, 384>}]} {
    %c0 = arith.constant 0 : index
    %c0_0 = arith.constant 0 : index
    %0 = vector.load %arg2[%c0, %c0_0] : memref<8x8xf32, #tpu.memory_space<vmem>>, vector<8x8xf32>
    %c0_1 = arith.constant 0 : index
    %c0_2 = arith.constant 0 : index
    %c0_3 = arith.constant 0 : index
    %1 = vector.load %arg3[%c0_1, %c0_2, %c0_3] : memref<1x8x384xf32, #tpu.memory_space<vmem>>, vector<1x8x384xf32>
    %2 = vector.shape_cast %1 : vector<1x8x384xf32> to vector<8x384xf32>
    %cst = arith.constant dense<0.000000e+00> : vector<8x384xf32>
    %3 = tpu.matmul %0, %2, %cst {dimension_numbers = #tpu.dot_dimension_numbers<[1], [0], [0], [1], [0, 0, 1, 1], [], []>} : vector<8x8xf32>, vector<8x384xf32>, vector<8x384xf32> -> vector<8x384xf32>
    %c0_4 = arith.constant 0 : index
    %c0_5 = arith.constant 0 : index
    %c0_6 = arith.constant 0 : index
    %4 = vector.load %arg4[%c0_4, %c0_5, %c0_6] : memref<1x8x384xf32, #tpu.memory_space<vmem>>, vector<1x8x384xf32>
    %5 = vector.shape_cast %4 : vector<1x8x384xf32> to vector<8x384xf32>
    %6 = vector.shape_cast %3 : vector<8x384xf32> to vector<1x8x384xf32>
    tpu.vector_store %arg4[%c0_4, %c0_5, %c0_6], %6 {strides = array<i32>} : memref<1x8x384xf32, #tpu.memory_space<vmem>>, vector<1x8x384xf32>,
    return
  }
  func.func @transform_0(%arg0: i32, %arg1: i32) -> (i32, i32) {
    %c0_i32 = arith.constant 0 : i32
    %c0_i32_0 = arith.constant 0 : i32
    %c0_i32_1 = arith.constant 0 : i32
    return %c0_i32, %c0_i32_0 : i32, i32
  }
  func.func @transform_1(%arg0: i32, %arg1: i32) -> (i32, i32, i32) {
    %c0_i32 = arith.constant 0 : i32
    %c0_i32_0 = arith.constant 0 : i32
    return %arg0, %c0_i32, %arg1 : i32, i32, i32
  }
  func.func @transform_2(%arg0: i32, %arg1: i32) -> (i32, i32, i32) {
    %c0_i32 = arith.constant 0 : i32
    %c0_i32_0 = arith.constant 0 : i32
    return %arg0, %c0_i32, %arg1 : i32, i32, i32
  }
}

</mosaic_0001>

<llo_original>
// kernel: tpu_custom_call.1
$region0: #{tpu_custom_call.1}
  #allocation0 [shape = 'u32[]', space=smem, size = 0x4, offset = 0x4, fixed_abs, tag = 'smem constant byte address 0x4 - core index']
  #allocation1 [shape = 'u32[72,128]{1,0:T(1,128)}', space=vmem, size = 0x9000, scoped, tag = 'internal scratch']
  %s0 = inlined_call_operand.hbm [shape: f32[8,8], index: 0, kind: input, shape index: {}]
  %s1 = inlined_call_operand.hbm [shape: f32[2,8,768], index: 1, kind: input, shape index: {}]
  %s2 = inlined_call_operand.hbm [shape: f32[2,8,768], index: 2, kind: output, shape index: {}]
  %s3 = sld [smem:[#allocation0]]
  $region49: #{tpu_custom_call.1} parent=0
    _
  %s5 = ssub.s32 1, %s3
  %s6 = scalar_select 0, %s5, %s3
  $region1: #{tpu_custom_call.1} parent=0
    #allocation2 [shape = 'u8[4096]{0}', space=vmem, size = 0x1000, scoped, tag = 'input window, operand 0, single buffered']
    #allocation3 [shape = 's32[2]{0}', space=sflag, size = 0x8, scoped, tag = 'scoped memory for tpu_custom_call.1']
    #allocation4 [shape = 's32[2]{0}', space=sflag, size = 0x8, scoped, tag = 'scoped memory for tpu_custom_call.1']
    #allocation5 [shape = 'u8[24576]{0}', space=vmem, size = 0x6000, scoped, tag = 'input window, operand 1']
    #allocation6 [shape = 's32[2]{0}', space=sflag, size = 0x8, scoped, tag = 'scoped memory for tpu_custom_call.1']
    #allocation7 [shape = 'u8[24576]{0}', space=vmem, size = 0x6000, scoped, tag = 'output window, operand 0']
    %7 = vsyncpa [#allocation3], 0
    %8 = vsyncpa [#allocation6], 0
    %s9 = scalar_lea.sflag [#allocation6], 1
    %10 = vsyncpa %s9, 0
    %11 = vsyncpa [#allocation4], 0
    %s12 = scalar_lea.sflag [#allocation4], 1
    %13 = vsyncpa %s12, 0
    loop: start=0, step=1, limit=6
    $region2: #{tpu_custom_call.1} parent=1 // loop_pre_header
      _
    $region3: #{tpu_custom_call.1} parent=1 // loop_header
      %s15 = sphi 0, %s19
      %p16 = scmp.ge.s32.totalorder %s15, 6
      %s22 = sphi 0, %s34
      %s23 = sphi 0, %s30
      %s24 = sphi 0, %s22
      %s25 = sphi 0, %s23
      %s26 = sphi 0, %s24
      %s27 = sphi 0, %s25
      %s35 = sphi 0, %s35
      %s37 = sphi 0, %s35
      %s38 = sphi 0, %s37
      %s52 = sphi 0, %s38
      %s60 = sphi 0, %s62
      %s63 = sphi 0, %s60
      %s64 = sphi 0, %s63
      %s80 = sphi 0, %s64
      %s88 = sphi 0, %s90
      %s91 = sphi 0, %s88
      %s92 = sphi 0, %s91
      %s108 = sphi 0, %s92
    $region4: #{tpu_custom_call.1} parent=1 // loop_header_branch
      %18 = sbr.rel (%p16) target = $region8
    $region5: #{tpu_custom_call.1} parent=1 // loop_body
      %s20 = ssub.s32 %s15, 1
      %s21 = ssub.s32 %s15, 2
      %s28 = sadd.s32 1, %s23
      %p29 = scmp.ge.s32.totalorder %s28, 2
      %s30 = scalar_select %p29, 0, %s28
      %s31 = sadd.s32 1, %s22
      %s32 = scalar_select %p29, %s31, %s22
      %p33 = scmp.ge.s32.totalorder %s32, 2
      %s34 = scalar_select %p33, 0, %s32
      %s36 = sadd.s32 %s35, 1
      %p39 = scmp.eq.s32.totalorder %s15, 3
      %p40 = scmp.ne.s32.totalorder %s35, %s37
      %p41 = scmp.eq.s32.totalorder %s15, 0
      %p42 = por %p40, %p41
      %p43 = scmp.ne.s32.totalorder %s35, %s37
      %p44 = scmp.eq.s32.totalorder %s20, 3
      %p45 = por %p43, %p44
      %p46 = scmp.ne.s32.totalorder %s37, %s38
      %p47 = scmp.eq.s32.totalorder %s20, 0
      %p48 = por %p46, %p47
      %p49 = scmp.ne.s32.totalorder %s37, %s38
      %p50 = scmp.eq.s32.totalorder %s21, 3
      %p51 = por %p49, %p50
      %p53 = scmp.ne.s32.totalorder %s38, %s52
      %p54 = scmp.eq.s32.totalorder %s21, 0
      %p55 = por %p53, %p54
      %s56 = ssub.s32 %s22, %s34
      %s57 = ssub.s32 %s23, %s30
      %s58 = sor.u32 %s56, %s57
      %p59 = scmp.eq.s32.totalorder %s58, 0
      %s61 = sadd.s32 %s60, 1
      %s62 = scalar_select %p59, %s60, %s61
      %p65 = pneg %p59
      %p66 = scmp.eq.s32.totalorder %s15, 3
      %p67 = por %p65, %p66
      %p68 = scmp.ne.s32.totalorder %s60, %s63
      %p69 = scmp.eq.s32.totalorder %s15, 0
      %p70 = por %p68, %p69
      %p71 = scmp.ne.s32.totalorder %s60, %s63
      %p72 = scmp.eq.s32.totalorder %s20, 3
      %p73 = por %p71, %p72
      %p74 = scmp.ne.s32.totalorder %s63, %s64
      %p75 = scmp.eq.s32.totalorder %s20, 0
      %p76 = por %p74, %p75
      %p77 = scmp.ne.s32.totalorder %s63, %s64
      %p78 = scmp.eq.s32.totalorder %s21, 3
      %p79 = por %p77, %p78
      %p81 = scmp.ne.s32.totalorder %s64, %s80
      %p82 = scmp.eq.s32.totalorder %s21, 0
      %p83 = por %p81, %p82
      %s84 = ssub.s32 %s22, %s34
      %s85 = ssub.s32 %s23, %s30
      %s86 = sor.u32 %s84, %s85
      %p87 = scmp.eq.s32.totalorder %s86, 0
      %s89 = sadd.s32 %s88, 1
      %s90 = scalar_select %p87, %s88, %s89
      %p93 = pneg %p87
      %p94 = scmp.eq.s32.totalorder %s15, 3
      %p95 = por %p93, %p94
      %p96 = scmp.ne.s32.totalorder %s88, %s91
      %p97 = scmp.eq.s32.totalorder %s15, 0
      %p98 = por %p96, %p97
      %p99 = scmp.ne.s32.totalorder %s88, %s91
      %p100 = scmp.eq.s32.totalorder %s20, 3
      %p101 = por %p99, %p100
      %p102 = scmp.ne.s32.totalorder %s91, %s92
      %p103 = scmp.eq.s32.totalorder %s20, 0
      %p104 = por %p102, %p103
      %p105 = scmp.ne.s32.totalorder %s91, %s92
      %p106 = scmp.eq.s32.totalorder %s21, 3
      %p107 = por %p105, %p106
      %p109 = scmp.ne.s32.totalorder %s92, %s108
      %p110 = scmp.eq.s32.totalorder %s21, 0
      %p111 = por %p109, %p110
      %p112 = scmp.le.s32.totalorder 1, %s15
      %p113 = scmp.lt.s32.totalorder %s15, 5
      %p114 = pnand %p112, %p113
      %p115 = pneg %p114
      // Predicated region
      $region9: #{tpu_custom_call.1} parent=5 // pred_check
        _
      $region10: #{tpu_custom_call.1} parent=5 // pred_check_branch
        %117 = sbr.rel (%p114) target = $region12
      $region11: #{tpu_custom_call.1} parent=5 // pred_region
        %s118 = ssub.s32 %s15, 1
        // Predicated region
        $region13: #{tpu_custom_call.1} parent=11 // pred_check
          %p119 = pneg %p48
        $region14: #{tpu_custom_call.1} parent=11 // pred_check_branch
          %121 = sbr.rel (%p119) target = $region16
        $region15: #{tpu_custom_call.1} parent=11 // pred_region
          %123 = vsyncadd [#allocation3], 0
          %s125 = sshll.u32 %s0, 4
          %s126 = int_to_ptr.hbm [resolvable:$true] %s125
          %s127 = sshll.u32 [#allocation2], 4
          %s128 = int_to_ptr.vmem [resolvable:$true] %s127
          %130 = dma.hbm_to_vmem [thread:$0]  %s126, 128, %s128, [#allocation3]
        $region16: #{tpu_custom_call.1} parent=11 // pred_fallthru
          _
      $region12: #{tpu_custom_call.1} parent=5 // pred_fallthru
        _
      %p131 = scmp.lt.s32.totalorder %s15, 4
      // Predicated region
      $region17: #{tpu_custom_call.1} parent=5 // pred_check
        %p132 = pneg %p131
      $region18: #{tpu_custom_call.1} parent=5 // pred_check_branch
        %134 = sbr.rel (%p132) target = $region20
      $region19: #{tpu_custom_call.1} parent=5 // pred_region
        // Predicated region
        $region21: #{tpu_custom_call.1} parent=19 // pred_check
          %p135 = pneg %p70
        $region22: #{tpu_custom_call.1} parent=19 // pred_check_branch
          %137 = sbr.rel (%p135) target = $region24
        $region23: #{tpu_custom_call.1} parent=19 // pred_region
          %s138 = sand.u32 %s60, 1
          %s139 = scalar_lea.sflag [#allocation6], %s138
          %s140 = sand.u32 %s60, 1
          %s141 = smul.addr %s140, 24
          %s142 = scalar_lea.vmem [#allocation5], %s141
          %s143 = smul.u32 3, %s23
          %145 = vsyncadd %s139, 0
          %s146 = smul.addr %s22, 6
          %s147 = sadd.s32 %s143, %s146
          %s148 = smul.addr %s147, 8
          %s149 = scalar_lea.hbm %s1, %s148
          %s151 = sshll.u32 %s149, 4
          %s152 = int_to_ptr.hbm [resolvable:$true] %s151
          %s153 = sshll.u32 %s142, 4
          %s154 = int_to_ptr.vmem [resolvable:$true] %s153
          %156 = dma.hbm_to_vmem [thread:$0]  %s152, 384, %s154, %s139
        $region24: #{tpu_custom_call.1} parent=19 // pred_fallthru
          _
      $region20: #{tpu_custom_call.1} parent=5 // pred_fallthru
        _
      %p157 = scmp.le.s32.totalorder 1, %s15
      %p158 = scmp.lt.s32.totalorder %s15, 5
      %p159 = pnand %p157, %p158
      %p160 = pneg %p159
      // Predicated region
      $region25: #{tpu_custom_call.1} parent=5 // pred_check
        _
      $region26: #{tpu_custom_call.1} parent=5 // pred_check_branch
        %162 = sbr.rel (%p159) target = $region28
      $region27: #{tpu_custom_call.1} parent=5 // pred_region
        %s163 = ssub.s32 %s15, 1
        // Predicated region
        $region29: #{tpu_custom_call.1} parent=27 // pred_check
          %p164 = pneg %p48
        $region30: #{tpu_custom_call.1} parent=27 // pred_check_branch
          %166 = sbr.rel (%p164) target = $region32
        $region31: #{tpu_custom_call.1} parent=27 // pred_region
          %168 = dma.done [#allocation3], 128
        $region32: #{tpu_custom_call.1} parent=27 // pred_fallthru
          _
        %s169 = sand.u32 %s63, 1
        %s170 = scalar_lea.sflag [#allocation6], %s169
        %s171 = sand.u32 %s63, 1
        %s172 = smul.addr %s171, 24
        %s173 = scalar_lea.vmem [#allocation5], %s172
        // Predicated region
        $region33: #{tpu_custom_call.1} parent=27 // pred_check
          %p174 = pneg %p76
        $region34: #{tpu_custom_call.1} parent=27 // pred_check_branch
          %176 = sbr.rel (%p174) target = $region36
        $region35: #{tpu_custom_call.1} parent=27 // pred_region
          %178 = dma.done %s170, 384
        $region36: #{tpu_custom_call.1} parent=27 // pred_fallthru
          _
        %p179 = pneg %p48
        %p180 = pneg %p45
        %s181 = sand.u32 %s63, 1
        %s182 = scalar_lea.sflag [#allocation6], %s181
        %s183 = sand.u32 %s63, 1
        %s184 = smul.addr %s183, 24
        %s185 = scalar_lea.vmem [#allocation5], %s184
        %p186 = pneg %p76
        %p187 = pneg %p73
        %p188 = pneg %p104
        %p189 = pneg %p101
        %s190 = sand.u32 %s91, 1
        %s191 = scalar_lea.sflag [#allocation4], %s190
        %s192 = sand.u32 %s91, 1
        %s193 = smul.addr %s192, 24
        %s194 = scalar_lea.vmem [#allocation7], %s193
        %s195 = smul.u32 3, %s25
        %s196 = smul.u32 3, %s25
        %v197 = vld [vmem:[#allocation2] sm:$0xff]
        %v198 = vld [vmem:[%s173] sm:$0xff]
        %v199 = vld [vmem:[%s173 + $0x8] sm:$0xff]
        %v200 = vld [vmem:[%s173 + $0x10] sm:$0xff]
        %vm201 = vcmask 64512
        %v203 = vsel %vm201, %v197, 0
        %205 = vmatpush.msra.mxu0 0.0
        %206 = vmatpush.msra.mxu0 0.0
        %207 = vmatpush.msra.mxu0 0.0
        %208 = vmatpush.msra.mxu0 0.0
        %209 = vmatpush.msra.mxu0 0.0
        %210 = vmatpush.msra.mxu0 0.0
        %211 = vmatpush.msra.mxu0 0.0
        %212 = vmatpush.msra.mxu0 0.0
        %213 = vmatpush.msra.mxu0 0.0
        %214 = vmatpush.msra.mxu0 0.0
        %215 = vmatpush.msra.mxu0 0.0
        %216 = vmatpush.msra.mxu0 0.0
        %217 = vmatpush.msra.mxu0 0.0
        %218 = vmatpush.msra.mxu0 0.0
        %219 = vmatpush.msra.mxu0 0.0
        %220 = vmatpush.msra.mxu0 %v198
        %221 = vmatmul.f32.gmra.mxu0 %v203
        %v222 = vpop.f32.mrf.mxu0
        %v223 = vadd.f32 0.0, %v222
        %224 = vdwg.mxu0
        %225 = vmatpush.msra.mxu0 0.0
        %226 = vmatpush.msra.mxu0 0.0
        %227 = vmatpush.msra.mxu0 0.0
        %228 = vmatpush.msra.mxu0 0.0
        %229 = vmatpush.msra.mxu0 0.0
        %230 = vmatpush.msra.mxu0 0.0
        %231 = vmatpush.msra.mxu0 0.0
        %232 = vmatpush.msra.mxu0 0.0
        %233 = vmatpush.msra.mxu0 0.0
        %234 = vmatpush.msra.mxu0 0.0
        %235 = vmatpush.msra.mxu0 0.0
        %236 = vmatpush.msra.mxu0 0.0
        %237 = vmatpush.msra.mxu0 0.0
        %238 = vmatpush.msra.mxu0 0.0
        %239 = vmatpush.msra.mxu0 0.0
        %240 = vmatpush.msra.mxu0 %v199
        %241 = vmatmul.f32.gmra.mxu0 %v203
        %v242 = vpop.f32.mrf.mxu0
        %v243 = vadd.f32 0.0, %v242
        %244 = vdwg.mxu0
        %245 = vmatpush.msra.mxu0 0.0
        %246 = vmatpush.msra.mxu0 0.0
        %247 = vmatpush.msra.mxu0 0.0
        %248 = vmatpush.msra.mxu0 0.0
        %249 = vmatpush.msra.mxu0 0.0
        %250 = vmatpush.msra.mxu0 0.0
        %251 = vmatpush.msra.mxu0 0.0
        %252 = vmatpush.msra.mxu0 0.0
        %253 = vmatpush.msra.mxu0 0.0
        %254 = vmatpush.msra.mxu0 0.0
        %255 = vmatpush.msra.mxu0 0.0
        %256 = vmatpush.msra.mxu0 0.0
        %257 = vmatpush.msra.mxu0 0.0
        %258 = vmatpush.msra.mxu0 0.0
        %259 = vmatpush.msra.mxu0 0.0
        %260 = vmatpush.msra.mxu0 %v200
        %261 = vmatmul.f32.gmra.mxu0 %v203
        %v262 = vpop.f32.mrf.mxu0
        %v263 = vadd.f32 0.0, %v262
        %264 = vdwg.mxu0
        %265 = vst [vmem:[%s194] sm:$0xff] %v223
        %266 = vst [vmem:[%s194 + $0x8] sm:$0xff] %v243
        %267 = vst [vmem:[%s194 + $0x10] sm:$0xff] %v263
        %s268 = sand.u32 %s91, 1
        %s269 = scalar_lea.sflag [#allocation4], %s268
        %s270 = sand.u32 %s91, 1
        %s271 = smul.addr %s270, 24
        %s272 = scalar_lea.vmem [#allocation7], %s271
        // Predicated region
        $region37: #{tpu_custom_call.1} parent=27 // pred_check
          %p273 = pneg %p101
        $region38: #{tpu_custom_call.1} parent=27 // pred_check_branch
          %275 = sbr.rel (%p273) target = $region40
        $region39: #{tpu_custom_call.1} parent=27 // pred_region
          %s276 = smul.u32 3, %s25
          %278 = vsyncadd %s269, 0
          %s279 = smul.addr %s24, 6
          %s280 = sadd.s32 %s276, %s279
          %s281 = smul.addr %s280, 8
          %s282 = scalar_lea.hbm %s2, %s281
          %s284 = sshll.u32 %s272, 4
          %s285 = int_to_ptr.vmem [resolvable:$true] %s284
          %s286 = sshll.u32 %s282, 4
          %s287 = int_to_ptr.hbm [resolvable:$true] %s286
          %289 = dma.vmem_to_hbm [thread:$0]  %s285, 384, %s287, %s269
        $region40: #{tpu_custom_call.1} parent=27 // pred_fallthru
          _
      $region28: #{tpu_custom_call.1} parent=5 // pred_fallthru
        _
      %p290 = scmp.le.s32.totalorder 2, %s15
      // Predicated region
      $region41: #{tpu_custom_call.1} parent=5 // pred_check
        %p291 = pneg %p290
      $region42: #{tpu_custom_call.1} parent=5 // pred_check_branch
        %293 = sbr.rel (%p291) target = $region44
      $region43: #{tpu_custom_call.1} parent=5 // pred_region
        %s294 = ssub.s32 %s15, 2
        // Predicated region
        $region45: #{tpu_custom_call.1} parent=43 // pred_check
          %p295 = pneg %p107
        $region46: #{tpu_custom_call.1} parent=43 // pred_check_branch
          %297 = sbr.rel (%p295) target = $region48
        $region47: #{tpu_custom_call.1} parent=43 // pred_region
          %s298 = sand.u32 %s92, 1
          %s299 = scalar_lea.sflag [#allocation4], %s298
          %s300 = sand.u32 %s92, 1
          %s301 = smul.addr %s300, 24
          %s302 = scalar_lea.vmem [#allocation7], %s301
          %304 = dma.done %s299, 384
        $region48: #{tpu_custom_call.1} parent=43 // pred_fallthru
          _
      $region44: #{tpu_custom_call.1} parent=5 // pred_fallthru
        _
    $region6: #{tpu_custom_call.1} parent=1 // loop_footer
      %s19 = sadd.s32 1, %s15
    $region7: #{tpu_custom_call.1} parent=1 // loop_footer_branch
      %14 = sbr.rel target = $region3
    $region8: #{tpu_custom_call.1} parent=1 // loop_exit
      _
    %305 = vsyncpa [#allocation3], 1
    %s306 = scalar_lea.sflag [#allocation3], 1
    %307 = vsyncpa %s306, 1
    %308 = vsyncpa [#allocation6], 1
    %s309 = scalar_lea.sflag [#allocation6], 1
    %310 = vsyncpa %s309, 1
    %311 = vsyncpa [#allocation4], 1
    %s312 = scalar_lea.sflag [#allocation4], 1
    %313 = vsyncpa %s312, 1

</llo_original>
